<compile_context>
chip_gen: v7x
topology: tpu7x:2x2x1
jax: 0.10.0
libtpu: 0.0.40
codegen_flags: <defaults>
</compile_context>

<pallas_src>
import math

import jax
import jax.numpy as jnp
from jax.experimental import pallas as pl
from jax.experimental.pallas import tpu as pltpu

LANE = 128
SUBLANE = 8


def _round_up(n, m):
    return ((n + m - 1) // m) * m


def qnet_kernel(x_ref, w1_ref, b1_ref, w2_ref, b2_ref, w3_ref, b3_ref, o_ref):
    """One batch tile of the 3-layer MLP, computed with batch on the lane dim.

    x_ref : (tile_b, S)      f32   -> transposed in-kernel to (S, tile_b)
    wN_ref: (outN_p, inN_p)  bf16  (nn.Linear-native [out, in] layout, zero-padded)
    bN_ref: (outN_p, 1)      f32
    o_ref : (A_pad8, tile_b) f32
    """
    # Transpose the x tile (cheap XLU work) and cast to bf16 in-kernel (free VPU work).
    xT = x_ref[...].T.astype(jnp.bfloat16)                         # (S, tile_b)

    # Layer 1: relu(W1 @ xT + b1) — bf16 MXU operands, f32 accumulation, f32 epilogue.
    h1 = jnp.dot(w1_ref[...], xT, preferred_element_type=jnp.float32) + b1_ref[...]
    h1 = jnp.maximum(h1, 0.0)                                      # (F1p, tile_b)

    # Layer 2: relu(W2 @ h1 + b2)
    h2 = jnp.dot(w2_ref[...], h1.astype(jnp.bfloat16),
                 preferred_element_type=jnp.float32) + b2_ref[...]
    h2 = jnp.maximum(h2, 0.0)                                      # (F2p, tile_b)

    # Layer 3: W3 @ h2 + b3 (no activation).  Only 8 output sublanes -> tiny writeback.
    o_ref[...] = (jnp.dot(w3_ref[...], h2.astype(jnp.bfloat16),
                          preferred_element_type=jnp.float32)
                  + b3_ref[...]).astype(o_ref.dtype)


def prepare_qnetwork_params(params):
    """Pad / transpose / cast the weights ONCE (outside the per-step forward path).

    Input layout: w in [in, out], b in [1, out] (see init_qnetwork_params).
    Output layout: w in [out_padded, in_padded] bf16, b in [out_padded, 1] f32.
    Call this once per parameter update (optimizer step / target-net sync), not per forward.
    """
    w1, b1 = params["w1"], params["b1"]
    w2, b2 = params["w2"], params["b2"]
    w3, b3 = params["w3"], params["b3"]

    S, F1 = w1.shape
    F2 = w2.shape[1]
    A = w3.shape[1]
    F1p = _round_up(F1, LANE)
    F2p = _round_up(F2, LANE)
    Ap8 = _round_up(A, SUBLANE)   # output rows only need sublane (8) alignment

    def pad2(a, rows, cols, dtype):
        return jnp.pad(a, ((0, rows - a.shape[0]), (0, cols - a.shape[1]))).astype(dtype)

    return {
        "w1t": pad2(w1.T, F1p, S, jnp.bfloat16),    # (F1p, S)
        "b1t": pad2(b1.T, F1p, 1, jnp.float32),     # (F1p, 1)
        "w2t": pad2(w2.T, F2p, F1p, jnp.bfloat16),  # (F2p, F1p)
        "b2t": pad2(b2.T, F2p, 1, jnp.float32),     # (F2p, 1)
        "w3t": pad2(w3.T, Ap8, F2p, jnp.bfloat16),  # (Ap8, F2p)
        "b3t": pad2(b3.T, Ap8, 1, jnp.float32),     # (Ap8, 1)
        "state_size": S,
        "action_size": A,
    }


def _batch_axis_semantics(num_blocks):
    """Split the batch grid across TensorCores on 2-TC chips (v7x); PARALLEL elsewhere."""
    kind = ""
    try:
        kind = jax.devices()[0].device_kind.lower()
    except Exception:
        pass
    if ("v7" in kind or "7x" in kind) and num_blocks % 2 == 0:
        return (pltpu.CORE_PARALLEL,)
    return (pltpu.PARALLEL,)


def qnetwork_forward(x, prepared, *, tile_b=2048):
    """x: [B, state_size] float32.  prepared: output of prepare_qnetwork_params."""
    w1t, b1t = prepared["w1t"], prepared["b1t"]
    w2t, b2t = prepared["w2t"], prepared["b2t"]
    w3t, b3t = prepared["w3t"], prepared["b3t"]
    A = prepared["action_size"]

    B, S = x.shape
    assert S == prepared["state_size"]
    F1p = w1t.shape[0]
    F2p = w2t.shape[0]
    Ap8 = w3t.shape[0]

    # Lane-dense batch tile (multiple of 128); clamp for small batches.  No padding of x:
    # Pallas's ragged last block handles B % tile_b != 0 (OOB output rows are discarded).
    tile_b = max(LANE, min(_round_up(tile_b, LANE), _round_up(B, LANE)))
    num_blocks = pl.cdiv(B, tile_b)

    const = lambda i: (0, 0)   # weights/biases stay resident in VMEM across grid steps

    flops = 2 * B * (S * F1p + F1p * F2p + F2p * Ap8)
    bytes_accessed = (x.size * 4
                      + (w1t.size + w2t.size + w3t.size) * 2
                      + (b1t.size + b2t.size + b3t.size) * 4
                      + Ap8 * B * 4)

    out_t = pl.pallas_call(
        qnet_kernel,
        out_shape=jax.ShapeDtypeStruct((Ap8, B), jnp.float32),
        grid=(num_blocks,),
        in_specs=[
            pl.BlockSpec((tile_b, S), lambda i: (i, 0)),   # x tile (double-buffered)
            pl.BlockSpec((F1p, S), const),                 # W1^T  (resident)
            pl.BlockSpec((F1p, 1), const),                 # b1
            pl.BlockSpec((F2p, F1p), const),               # W2^T
            pl.BlockSpec((F2p, 1), const),                 # b2
            pl.BlockSpec((Ap8, F2p), const),               # W3^T
            pl.BlockSpec((Ap8, 1), const),                 # b3
        ],
        out_specs=pl.BlockSpec((Ap8, tile_b), lambda i: (0, i)),  # 32 B/row writeback
        compiler_params=pltpu.CompilerParams(
            dimension_semantics=_batch_axis_semantics(num_blocks),
            vmem_limit_bytes=32 * 1024 * 1024,
        ),
        cost_estimate=pl.CostEstimate(flops=flops, transcendentals=0,
                                      bytes_accessed=bytes_accessed),
    )(x, w1t, b1t, w2t, b2t, w3t, b3t)

    # Tiny [Ap8, B] -> [B, A] slice + transpose (32 B/row), matching nn.Module's output.
    return out_t[:A, :].T


def init_qnetwork_params(key, state_size, action_size, fc1_units=128, fc2_units=64):
    """Deterministic init mimicking nn.Linear's default U(-1/sqrt(fan_in), +1/sqrt(fan_in))."""
    keys = jax.random.split(key, 6)

    def linear_init(kw, kb, fan_in, fan_out):
        bound = 1.0 / math.sqrt(fan_in)
        w = jax.random.uniform(kw, (fan_in, fan_out), jnp.float32, -bound, bound)
        b = jax.random.uniform(kb, (1, fan_out), jnp.float32, -bound, bound)
        return w, b

    w1, b1 = linear_init(keys[0], keys[1], state_size, fc1_units)
    w2, b2 = linear_init(keys[2], keys[3], fc1_units, fc2_units)
    w3, b3 = linear_init(keys[4], keys[5], fc2_units, action_size)
    return {"w1": w1, "b1": b1, "w2": w2, "b2": b2, "w3": w3, "b3": b3}


def qnetwork_reference(x, params, matmul_dtype=jnp.float32):
    """Plain-JAX reference with selectable matmul operand dtype (f32 accumulation)."""
    def mm(a, w):
        return jnp.dot(a.astype(matmul_dtype), w.astype(matmul_dtype),
                       preferred_element_type=jnp.float32)
    h1 = jnp.maximum(mm(x, params["w1"]) + params["b1"], 0.0)
    h2 = jnp.maximum(mm(h1, params["w2"]) + params["b2"], 0.0)
    return mm(h2, params["w3"]) + params["b3"]


if __name__ == "__main__":
    key = jax.random.PRNGKey(0)
    k_params, k_x, k_xb = jax.random.split(key, 3)

    # NOTE: B=8 is a correctness smoke test only; per-call overhead dominates here.
    # In the RL training loop call this with replay-buffer-sized batches.
    batch = 8
    state_size = 8
    action_size = 4

    params = init_qnetwork_params(k_params, state_size, action_size,
                                  fc1_units=128, fc2_units=64)
    prepared = prepare_qnetwork_params(params)   # hoisted out of the hot path

    x = jax.random.normal(k_x, (batch, state_size), dtype=jnp.float32)
    out = jax.block_until_ready(qnetwork_forward(x, prepared))
    assert out.shape == (batch, action_size)

    # Tight check against a reference using the same bf16-operand / f32-accum math.
    ref_bf16 = qnetwork_reference(x, params, matmul_dtype=jnp.bfloat16)
    assert jnp.allclose(out, ref_bf16, atol=1e-3, rtol=1e-3)

    # Loose check against the full-f32 PyTorch-equivalent math (bf16 cast error only).
    ref_f32 = qnetwork_reference(x, params, matmul_dtype=jnp.float32)
    assert jnp.allclose(out, ref_f32, atol=5e-2, rtol=5e-2)

    # Multi-step grid with a ragged last block (300 rows, tile_b=128 -> 3 grid steps).
    xb = jax.random.normal(k_xb, (300, state_size), dtype=jnp.float32)
    outb = jax.block_until_ready(qnetwork_forward(xb, prepared, tile_b=128))
    assert outb.shape == (300, action_size)
    refb = qnetwork_reference(xb, params, matmul_dtype=jnp.bfloat16)
    assert jnp.allclose(outb, refb, atol=1e-3, rtol=1e-3)

    print("KERNEL_OK")
</pallas_src>

<mosaic_0001>
module attributes {stable_mosaic.version = 11 : i64} {
  func.func @qnet_kernel(%arg0: i32, %arg1: memref<128x8xf32, #tpu.memory_space<vmem>>, %arg2: memref<128x8xbf16, #tpu.memory_space<vmem>>, %arg3: memref<128x1xf32, #tpu.memory_space<vmem>>, %arg4: memref<128x128xbf16, #tpu.memory_space<vmem>>, %arg5: memref<128x1xf32, #tpu.memory_space<vmem>>, %arg6: memref<8x128xbf16, #tpu.memory_space<vmem>>, %arg7: memref<8x1xf32, #tpu.memory_space<vmem>>, %arg8: memref<8x128xf32, #tpu.memory_space<vmem>>) attributes {dimension_semantics = [#tpu.dimension_semantics<parallel>], iteration_bounds = array<i64: 1>, scalar_prefetch = 0 : i64, scratch_operands = 0 : i64, tpu.core_type = #tpu.core_type<tc>, window_params = [{transform_indices = @transform_0, window_bounds = array<i64: 128, 8>}, {pipeline_mode = #tpu.pipeline_mode<synchronous>, transform_indices = @transform_1, window_bounds = array<i64: 128, 8>}, {pipeline_mode = #tpu.pipeline_mode<synchronous>, transform_indices = @transform_2, window_bounds = array<i64: 128, 1>}, {pipeline_mode = #tpu.pipeline_mode<synchronous>, transform_indices = @transform_3, window_bounds = array<i64: 128, 128>}, {pipeline_mode = #tpu.pipeline_mode<synchronous>, transform_indices = @transform_4, window_bounds = array<i64: 128, 1>}, {pipeline_mode = #tpu.pipeline_mode<synchronous>, transform_indices = @transform_5, window_bounds = array<i64: 8, 128>}, {pipeline_mode = #tpu.pipeline_mode<synchronous>, transform_indices = @transform_6, window_bounds = array<i64: 8, 1>}, {transform_indices = @transform_7, window_bounds = array<i64: 8, 128>}]} {
    %c0 = arith.constant 0 : index
    %c0_0 = arith.constant 0 : index
    %0 = vector.load %arg1[%c0, %c0_0] : memref<128x8xf32, #tpu.memory_space<vmem>>, vector<128x8xf32>
    %1 = tpu.transpose %0, [1, 0] : vector<128x8xf32> -> vector<8x128xf32>
    %2 = arith.truncf %1 : vector<8x128xf32> to vector<8x128xbf16>
    %c0_1 = arith.constant 0 : index
    %c0_2 = arith.constant 0 : index
    %3 = vector.load %arg2[%c0_1, %c0_2] : memref<128x8xbf16, #tpu.memory_space<vmem>>, vector<128x8xbf16>
    %cst = arith.constant dense<0.000000e+00> : vector<128x128xf32>
    %4 = tpu.matmul %3, %2, %cst {dimension_numbers = #tpu.dot_dimension_numbers<[1], [0], [0], [1], [0, 0, 1, 1], [], []>} : vector<128x8xbf16>, vector<8x128xbf16>, vector<128x128xf32> -> vector<128x128xf32>
    %c0_3 = arith.constant 0 : index
    %c0_4 = arith.constant 0 : index
    %5 = vector.load %arg3[%c0_3, %c0_4] : memref<128x1xf32, #tpu.memory_space<vmem>>, vector<128x1xf32>
    %6 = vector.broadcast %5 : vector<128x1xf32> to vector<128x128xf32>
    %7 = arith.addf %4, %6 : vector<128x128xf32>
    %cst_5 = arith.constant 0.000000e+00 : f32
    %8 = vector.broadcast %cst_5 : f32 to vector<128x128xf32>
    %9 = arith.maximumf %7, %8 : vector<128x128xf32>
    %c0_6 = arith.constant 0 : index
    %c0_7 = arith.constant 0 : index
    %10 = vector.load %arg4[%c0_6, %c0_7] : memref<128x128xbf16, #tpu.memory_space<vmem>>, vector<128x128xbf16>
    %11 = arith.truncf %9 : vector<128x128xf32> to vector<128x128xbf16>
    %cst_8 = arith.constant dense<0.000000e+00> : vector<128x128xf32>
    %12 = tpu.matmul %10, %11, %cst_8 {dimension_numbers = #tpu.dot_dimension_numbers<[1], [0], [0], [1], [0, 0, 1, 1], [], []>} : vector<128x128xbf16>, vector<128x128xbf16>, vector<128x128xf32> -> vector<128x128xf32>
    %c0_9 = arith.constant 0 : index
    %c0_10 = arith.constant 0 : index
    %13 = vector.load %arg5[%c0_9, %c0_10] : memref<128x1xf32, #tpu.memory_space<vmem>>, vector<128x1xf32>
    %14 = vector.broadcast %13 : vector<128x1xf32> to vector<128x128xf32>
    %15 = arith.addf %12, %14 : vector<128x128xf32>
    %cst_11 = arith.constant 0.000000e+00 : f32
    %16 = vector.broadcast %cst_11 : f32 to vector<128x128xf32>
    %17 = arith.maximumf %15, %16 : vector<128x128xf32>
    %c0_12 = arith.constant 0 : index
    %c0_13 = arith.constant 0 : index
    %18 = vector.load %arg6[%c0_12, %c0_13] : memref<8x128xbf16, #tpu.memory_space<vmem>>, vector<8x128xbf16>
    %19 = arith.truncf %17 : vector<128x128xf32> to vector<128x128xbf16>
    %cst_14 = arith.constant dense<0.000000e+00> : vector<8x128xf32>
    %20 = tpu.matmul %18, %19, %cst_14 {dimension_numbers = #tpu.dot_dimension_numbers<[1], [0], [0], [1], [0, 0, 1, 1], [], []>} : vector<8x128xbf16>, vector<128x128xbf16>, vector<8x128xf32> -> vector<8x128xf32>
    %c0_15 = arith.constant 0 : index
    %c0_16 = arith.constant 0 : index
    %21 = vector.load %arg7[%c0_15, %c0_16] : memref<8x1xf32, #tpu.memory_space<vmem>>, vector<8x1xf32>
    %22 = vector.broadcast %21 : vector<8x1xf32> to vector<8x128xf32>
    %23 = arith.addf %20, %22 : vector<8x128xf32>
    %c0_17 = arith.constant 0 : index
    %c0_18 = arith.constant 0 : index
    %24 = vector.load %arg8[%c0_17, %c0_18] : memref<8x128xf32, #tpu.memory_space<vmem>>, vector<8x128xf32>
    tpu.vector_store %arg8[%c0_17, %c0_18], %23 {strides = array<i32>} : memref<8x128xf32, #tpu.memory_space<vmem>>, vector<8x128xf32>,
    return
  }
  func.func @transform_0(%arg0: i32) -> (i32, i32) {
    %c0_i32 = arith.constant 0 : i32
    %c0_i32_0 = arith.constant 0 : i32
    return %arg0, %c0_i32 : i32, i32
  }
  func.func @transform_1(%arg0: i32) -> (i32, i32) {
    %c0_i32 = arith.constant 0 : i32
    %c0_i32_0 = arith.constant 0 : i32
    %c0_i32_1 = arith.constant 0 : i32
    return %c0_i32, %c0_i32_0 : i32, i32
  }
  func.func @transform_2(%arg0: i32) -> (i32, i32) {
    %c0_i32 = arith.constant 0 : i32
    %c0_i32_0 = arith.constant 0 : i32
    %c0_i32_1 = arith.constant 0 : i32
    return %c0_i32, %c0_i32_0 : i32, i32
  }
  func.func @transform_3(%arg0: i32) -> (i32, i32) {
    %c0_i32 = arith.constant 0 : i32
    %c0_i32_0 = arith.constant 0 : i32
    %c0_i32_1 = arith.constant 0 : i32
    return %c0_i32, %c0_i32_0 : i32, i32
  }
  func.func @transform_4(%arg0: i32) -> (i32, i32) {
    %c0_i32 = arith.constant 0 : i32
    %c0_i32_0 = arith.constant 0 : i32
    %c0_i32_1 = arith.constant 0 : i32
    return %c0_i32, %c0_i32_0 : i32, i32
  }
  func.func @transform_5(%arg0: i32) -> (i32, i32) {
    %c0_i32 = arith.constant 0 : i32
    %c0_i32_0 = arith.constant 0 : i32
    %c0_i32_1 = arith.constant 0 : i32
    return %c0_i32, %c0_i32_0 : i32, i32
  }
  func.func @transform_6(%arg0: i32) -> (i32, i32) {
    %c0_i32 = arith.constant 0 : i32
    %c0_i32_0 = arith.constant 0 : i32
    %c0_i32_1 = arith.constant 0 : i32
    return %c0_i32, %c0_i32_0 : i32, i32
  }
  func.func @transform_7(%arg0: i32) -> (i32, i32) {
    %c0_i32 = arith.constant 0 : i32
    %c0_i32_0 = arith.constant 0 : i32
    return %c0_i32, %arg0 : i32, i32
  }
}

</mosaic_0001>

<llo_original>
// kernel: tpu_custom_call.1
$region0: #{tpu_custom_call.1}
  #allocation0 [shape = 'u32[]', space=smem, size = 0x4, offset = 0x4, fixed_abs, tag = 'smem constant byte address 0x4 - core index']
  #allocation1 [shape = 'u32[144,128]{1,0:T(1,128)}', space=vmem, size = 0x12000, scoped, tag = 'internal scratch']
  %s0 = inlined_call_operand.vmem [shape: f32[8,8], index: 0, kind: input, shape index: {}]
  %s1 = inlined_call_operand.vmem [shape: bf16[128,8], index: 1, kind: input, shape index: {}]
  %s2 = inlined_call_operand.vmem [shape: f32[128,1], index: 2, kind: input, shape index: {}]
  %s3 = inlined_call_operand.vmem [shape: bf16[128,128], index: 3, kind: input, shape index: {}]
  %s4 = inlined_call_operand.vmem [shape: f32[128,1], index: 4, kind: input, shape index: {}]
  %s5 = inlined_call_operand.vmem [shape: bf16[8,128], index: 5, kind: input, shape index: {}]
  %s6 = inlined_call_operand.vmem [shape: f32[8,1], index: 6, kind: input, shape index: {}]
  %s7 = inlined_call_operand.hbm [shape: f32[8,8], index: 7, kind: output, shape index: {}]
  %s8 = sld [smem:[#allocation0]]
  $region38: #{tpu_custom_call.1} parent=0
    _
  %s10 = ssub.s32 1, %s8
  %s11 = scalar_select 0, %s10, %s8
  $region1: #{tpu_custom_call.1} parent=0
    #allocation2 [shape = 'u8[4096]{0}', space=vmem, size = 0x1000, scoped, tag = 'output window, operand 0, single buffered']
    #allocation3 [shape = 's32[1]{0}', space=sflag, size = 0x4, scoped, tag = 'scoped memory for tpu_custom_call.1']
    %12 = vsyncpa [#allocation3], 0
    // Predicated region
    $region2: #{tpu_custom_call.1} parent=1 // pred_check
      _
    $region3: #{tpu_custom_call.1} parent=1 // pred_check_branch
      %14 = sbr.rel (0) target = $region5
    $region4: #{tpu_custom_call.1} parent=1 // pred_region
      _
    $region5: #{tpu_custom_call.1} parent=1 // pred_fallthru
      _
    // Predicated region
    $region6: #{tpu_custom_call.1} parent=1 // pred_check
      _
    $region7: #{tpu_custom_call.1} parent=1 // pred_check_branch
      %16 = sbr.rel (0) target = $region9
    $region8: #{tpu_custom_call.1} parent=1 // pred_region
      _
    $region9: #{tpu_custom_call.1} parent=1 // pred_fallthru
      _
    // Predicated region
    $region10: #{tpu_custom_call.1} parent=1 // pred_check
      _
    $region11: #{tpu_custom_call.1} parent=1 // pred_check_branch
      %18 = sbr.rel (0) target = $region13
    $region12: #{tpu_custom_call.1} parent=1 // pred_region
      _
    $region13: #{tpu_custom_call.1} parent=1 // pred_fallthru
      _
    // Predicated region
    $region14: #{tpu_custom_call.1} parent=1 // pred_check
      _
    $region15: #{tpu_custom_call.1} parent=1 // pred_check_branch
      %20 = sbr.rel (0) target = $region17
    $region16: #{tpu_custom_call.1} parent=1 // pred_region
      _
    $region17: #{tpu_custom_call.1} parent=1 // pred_fallthru
      _
    // Predicated region
    $region18: #{tpu_custom_call.1} parent=1 // pred_check
      _
    $region19: #{tpu_custom_call.1} parent=1 // pred_check_branch
      %22 = sbr.rel (0) target = $region21
    $region20: #{tpu_custom_call.1} parent=1 // pred_region
      _
    $region21: #{tpu_custom_call.1} parent=1 // pred_fallthru
      _
    // Predicated region
    $region22: #{tpu_custom_call.1} parent=1 // pred_check
      _
    $region23: #{tpu_custom_call.1} parent=1 // pred_check_branch
      %24 = sbr.rel (0) target = $region25
    $region24: #{tpu_custom_call.1} parent=1 // pred_region
      _
    $region25: #{tpu_custom_call.1} parent=1 // pred_fallthru
      _
    // Predicated region
    $region26: #{tpu_custom_call.1} parent=1 // pred_check
      _
    $region27: #{tpu_custom_call.1} parent=1 // pred_check_branch
      %26 = sbr.rel (0) target = $region29
    $region28: #{tpu_custom_call.1} parent=1 // pred_region
      _
    $region29: #{tpu_custom_call.1} parent=1 // pred_fallthru
      _
    %v28 = vld [vmem:[%s0] sm:$0xff]
    %v29 = vld [vmem:[%s0 + $0x8] sm:$0xff]
    %v30 = vld [vmem:[%s0 + $0x10] sm:$0xff]
    %v31 = vld [vmem:[%s0 + $0x18] sm:$0xff]
    %v32 = vld [vmem:[%s0 + $0x20] sm:$0xff]
    %v33 = vld [vmem:[%s0 + $0x28] sm:$0xff]
    %v34 = vld [vmem:[%s0 + $0x30] sm:$0xff]
    %v35 = vld [vmem:[%s0 + $0x38] sm:$0xff]
    %v36 = vld [vmem:[%s0 + $0x40] sm:$0xff]
    %v37 = vld [vmem:[%s0 + $0x48] sm:$0xff]
    %v38 = vld [vmem:[%s0 + $0x50] sm:$0xff]
    %v39 = vld [vmem:[%s0 + $0x58] sm:$0xff]
    %v40 = vld [vmem:[%s0 + $0x60] sm:$0xff]
    %v41 = vld [vmem:[%s0 + $0x68] sm:$0xff]
    %v42 = vld [vmem:[%s0 + $0x70] sm:$0xff]
    %v43 = vld [vmem:[%s0 + $0x78] sm:$0xff]
    %44 = vxpose.xlu0.b32.start [1/16] %v28, 128
    %45 = vxpose.xlu0.b32.cont [2/16] %v29, 128
    %46 = vxpose.xlu0.b32.cont [3/16] %v30, 128
    %47 = vxpose.xlu0.b32.cont [4/16] %v31, 128
    %48 = vxpose.xlu0.b32.cont [5/16] %v32, 128
    %49 = vxpose.xlu0.b32.cont [6/16] %v33, 128
    %50 = vxpose.xlu0.b32.cont [7/16] %v34, 128
    %51 = vxpose.xlu0.b32.cont [8/16] %v35, 128
    %52 = vxpose.xlu0.b32.cont [9/16] %v36, 128
    %53 = vxpose.xlu0.b32.cont [10/16] %v37, 128
    %54 = vxpose.xlu0.b32.cont [11/16] %v38, 128
    %55 = vxpose.xlu0.b32.cont [12/16] %v39, 128
    %56 = vxpose.xlu0.b32.cont [13/16] %v40, 128
    %57 = vxpose.xlu0.b32.cont [14/16] %v41, 128
    %58 = vxpose.xlu0.b32.cont [15/16] %v42, 128
    %59 = vxpose.xlu0.b32.end [16/16] %v43, 128
    %v60 = vpop.trf.xlu0
    %v61 = vpop.trf.xlu0
    %v62 = vpop.trf.xlu0
    %v63 = vpop.trf.xlu0
    %v64 = vpop.trf.xlu0
    %v65 = vpop.trf.xlu0
    %v66 = vpop.trf.xlu0
    %v67 = vpop.trf.xlu0
    %v68 = vpop.trf.xlu0
    %v69 = vpop.trf.xlu0
    %v70 = vpop.trf.xlu0
    %v71 = vpop.trf.xlu0
    %v72 = vpop.trf.xlu0
    %v73 = vpop.trf.xlu0
    %v74 = vpop.trf.xlu0
    %v75 = vpop.trf.xlu0
    %v76 = vpack.c.bf16 %v60, %v60
    %v77 = vld [vmem:[%s1] sm:$0xf]
    %v78 = vld [vmem:[%s1 + $0x4] sm:$0xf]
    %v79 = vld [vmem:[%s1 + $0x8] sm:$0xf]
    %v80 = vld [vmem:[%s1 + $0xc] sm:$0xf]
    %v81 = vld [vmem:[%s1 + $0x10] sm:$0xf]
    %v82 = vld [vmem:[%s1 + $0x14] sm:$0xf]
    %v83 = vld [vmem:[%s1 + $0x18] sm:$0xf]
    %v84 = vld [vmem:[%s1 + $0x1c] sm:$0xf]
    %v85 = vld [vmem:[%s1 + $0x20] sm:$0xf]
    %v86 = vld [vmem:[%s1 + $0x24] sm:$0xf]
    %v87 = vld [vmem:[%s1 + $0x28] sm:$0xf]
    %v88 = vld [vmem:[%s1 + $0x2c] sm:$0xf]
    %v89 = vld [vmem:[%s1 + $0x30] sm:$0xf]
    %v90 = vld [vmem:[%s1 + $0x34] sm:$0xf]
    %v91 = vld [vmem:[%s1 + $0x38] sm:$0xf]
    %v92 = vld [vmem:[%s1 + $0x3c] sm:$0xf]
    %v93 = vld [vmem:[%s2] sm:$0xff]
    %v94 = vld [vmem:[%s2 + $0x8] sm:$0xff]
    %v95 = vld [vmem:[%s2 + $0x10] sm:$0xff]
    %v96 = vld [vmem:[%s2 + $0x18] sm:$0xff]
    %v97 = vld [vmem:[%s2 + $0x20] sm:$0xff]
    %v98 = vld [vmem:[%s2 + $0x28] sm:$0xff]
    %v99 = vld [vmem:[%s2 + $0x30] sm:$0xff]
    %v100 = vld [vmem:[%s2 + $0x38] sm:$0xff]
    %v101 = vld [vmem:[%s2 + $0x40] sm:$0xff]
    %v102 = vld [vmem:[%s2 + $0x48] sm:$0xff]
    %v103 = vld [vmem:[%s2 + $0x50] sm:$0xff]
    %v104 = vld [vmem:[%s2 + $0x58] sm:$0xff]
    %v105 = vld [vmem:[%s2 + $0x60] sm:$0xff]
    %v106 = vld [vmem:[%s2 + $0x68] sm:$0xff]
    %v107 = vld [vmem:[%s2 + $0x70] sm:$0xff]
    %v108 = vld [vmem:[%s2 + $0x78] sm:$0xff]
    %110 = vset.pattern.permute.xlu0 0
    %111 = vperm.xlu0 %110, %v93
    %v112 = vpop.permute.xlu0 %111
    %115 = vset.pattern.permute.xlu0 0
    %116 = vperm.xlu0 %115, %v94
    %v117 = vpop.permute.xlu0 %116
    %120 = vset.pattern.permute.xlu0 0
    %121 = vperm.xlu0 %120, %v95
    %v122 = vpop.permute.xlu0 %121
    %125 = vset.pattern.permute.xlu0 0
    %126 = vperm.xlu0 %125, %v96
    %v127 = vpop.permute.xlu0 %126
    %130 = vset.pattern.permute.xlu0 0
    %131 = vperm.xlu0 %130, %v97
    %v132 = vpop.permute.xlu0 %131
    %135 = vset.pattern.permute.xlu0 0
    %136 = vperm.xlu0 %135, %v98
    %v137 = vpop.permute.xlu0 %136
    %140 = vset.pattern.permute.xlu0 0
    %141 = vperm.xlu0 %140, %v99
    %v142 = vpop.permute.xlu0 %141
    %145 = vset.pattern.permute.xlu0 0
    %146 = vperm.xlu0 %145, %v100
    %v147 = vpop.permute.xlu0 %146
    %150 = vset.pattern.permute.xlu0 0
    %151 = vperm.xlu0 %150, %v101
    %v152 = vpop.permute.xlu0 %151
    %155 = vset.pattern.permute.xlu0 0
    %156 = vperm.xlu0 %155, %v102
    %v157 = vpop.permute.xlu0 %156
    %160 = vset.pattern.permute.xlu0 0
    %161 = vperm.xlu0 %160, %v103
    %v162 = vpop.permute.xlu0 %161
    %165 = vset.pattern.permute.xlu0 0
    %166 = vperm.xlu0 %165, %v104
    %v167 = vpop.permute.xlu0 %166
    %170 = vset.pattern.permute.xlu0 0
    %171 = vperm.xlu0 %170, %v105
    %v172 = vpop.permute.xlu0 %171
    %175 = vset.pattern.permute.xlu0 0
    %176 = vperm.xlu0 %175, %v106
    %v177 = vpop.permute.xlu0 %176
    %180 = vset.pattern.permute.xlu0 0
    %181 = vperm.xlu0 %180, %v107
    %v182 = vpop.permute.xlu0 %181
    %185 = vset.pattern.permute.xlu0 0
    %186 = vperm.xlu0 %185, %v108
    %v187 = vpop.permute.xlu0 %186
    %v205 = vunpack.c.l.b16 %v77
    %v206 = vunpack.c.l.b16 %v78
    %v207 = vunpack.c.l.b16 %v79
    %v208 = vunpack.c.l.b16 %v80
    %v209 = vunpack.c.l.b16 %v81
    %v210 = vunpack.c.l.b16 %v82
    %v211 = vunpack.c.l.b16 %v83
    %v212 = vunpack.c.l.b16 %v84
    %v213 = vunpack.c.l.b16 %v85
    %v214 = vunpack.c.l.b16 %v86
    %v215 = vunpack.c.l.b16 %v87
    %v216 = vunpack.c.l.b16 %v88
    %v217 = vunpack.c.l.b16 %v89
    %v218 = vunpack.c.l.b16 %v90
    %v219 = vunpack.c.l.b16 %v91
    %v220 = vunpack.c.l.b16 %v92
    %v221 = vpack.c.b16 %v206, %v205
    %v222 = vpack.c.b16 %v208, %v207
    %v223 = vpack.c.b16 %v210, %v209
    %v224 = vpack.c.b16 %v212, %v211
    %v225 = vpack.c.b16 %v214, %v213
    %v226 = vpack.c.b16 %v216, %v215
    %v227 = vpack.c.b16 %v218, %v217
    %v228 = vpack.c.b16 %v220, %v219
    %vm229 = vcmask 64512
    %v231 = vsel %vm229, %v221, 0
    %v234 = vsel %vm229, %v222, 0
    %v237 = vsel %vm229, %v223, 0
    %v240 = vsel %vm229, %v224, 0
    %v243 = vsel %vm229, %v225, 0
    %v246 = vsel %vm229, %v226, 0
    %v249 = vsel %vm229, %v227, 0
    %v252 = vsel %vm229, %v228, 0
    %vm254 = vcmask 1043456
    %v256 = vsel %vm254, %v76, 0
    %258 = vmatprep.subr.bf16.mxu0 0
    %259 = vmatpush1.bf16.msra.mxu0 %v256
    %260 = vmatprep.subr.bf16.mxu0 0
    %261 = vmatpush1.bf16.msra.mxu0 0
    %262 = vmatprep.subr.bf16.mxu0 0
    %263 = vmatpush1.bf16.msra.mxu0 0
    %264 = vmatprep.subr.bf16.mxu0 0
    %265 = vmatpush1.bf16.msra.mxu0 0
    %266 = vmatprep.subr.bf16.mxu0 0
    %267 = vmatpush1.bf16.msra.mxu0 0
    %268 = vmatprep.subr.bf16.mxu0 0
    %269 = vmatpush1.bf16.msra.mxu0 0
    %270 = vmatprep.subr.bf16.mxu0 0
    %271 = vmatpush1.bf16.msra.mxu0 0
    %272 = vmatprep.subr.bf16.mxu0 0
    %273 = vmatpush1.bf16.msra.mxu0 0
    %274 = vmatprep.subr.bf16.mxu0 0
    %275 = vmatpush1.bf16.msra.mxu0 0
    %276 = vmatprep.subr.bf16.mxu0 0
    %277 = vmatpush1.bf16.msra.mxu0 0
    %278 = vmatprep.subr.bf16.mxu0 0
    %279 = vmatpush1.bf16.msra.mxu0 0
    %280 = vmatprep.subr.bf16.mxu0 0
    %281 = vmatpush1.bf16.msra.mxu0 0
    %282 = vmatprep.subr.bf16.mxu0 0
    %283 = vmatpush1.bf16.msra.mxu0 0
    %284 = vmatprep.subr.bf16.mxu0 0
    %285 = vmatpush1.bf16.msra.mxu0 0
    %286 = vmatprep.subr.bf16.mxu0 0
    %287 = vmatpush1.bf16.msra.mxu0 0
    %288 = vmatprep.subr.bf16.mxu0 0
    %289 = vmatpush1.bf16.msra.mxu0 0
    %290 = vmatprep.mubr.bf16.mxu0 0
    %291 = vmatmul.mubr.bf16.gmra.mrb[0].mxu0 %v231
    %v292 = vpop.f32.mrb[0].mxu0
    %v293 = vadd.f32 %v112, %v292
    %v294 = vpop.f32.mrb[0].mxu0
    %v295 = vpop.f32.mrb[0].mxu0
    %v296 = vadd.f32 %v117, %v295
    %v297 = vpop.f32.mrb[0].mxu0
    %298 = vmatprep.mubr.bf16.mxu0 0
    %299 = vmatmul.mubr.bf16.gmra.mrb[0].mxu0 %v234
    %v300 = vpop.f32.mrb[0].mxu0
    %v301 = vadd.f32 %v122, %v300
    %v302 = vpop.f32.mrb[0].mxu0
    %v303 = vpop.f32.mrb[0].mxu0
    %v304 = vadd.f32 %v127, %v303
    %v305 = vpop.f32.mrb[0].mxu0
    %306 = vmatprep.mubr.bf16.mxu0 0
    %307 = vmatmul.mubr.bf16.gmra.mrb[0].mxu0 %v237
    %v308 = vpop.f32.mrb[0].mxu0
    %v309 = vadd.f32 %v132, %v308
    %v310 = vpop.f32.mrb[0].mxu0
    %v311 = vpop.f32.mrb[0].mxu0
    %v312 = vadd.f32 %v137, %v311
    %v313 = vpop.f32.mrb[0].mxu0
    %314 = vmatprep.mubr.bf16.mxu0 0
    %315 = vmatmul.mubr.bf16.gmra.mrb[0].mxu0 %v240
    %v316 = vpop.f32.mrb[0].mxu0
    %v317 = vadd.f32 %v142, %v316
    %v318 = vpop.f32.mrb[0].mxu0
    %v319 = vpop.f32.mrb[0].mxu0
    %v320 = vadd.f32 %v147, %v319
    %v321 = vpop.f32.mrb[0].mxu0
    %322 = vmatprep.mubr.bf16.mxu0 0
    %323 = vmatmul.mubr.bf16.gmra.mrb[0].mxu0 %v243
    %v324 = vpop.f32.mrb[0].mxu0
    %v325 = vadd.f32 %v152, %v324
    %v326 = vpop.f32.mrb[0].mxu0
    %v327 = vpop.f32.mrb[0].mxu0
    %v328 = vadd.f32 %v157, %v327
    %v329 = vpop.f32.mrb[0].mxu0
    %330 = vmatprep.mubr.bf16.mxu0 0
    %331 = vmatmul.mubr.bf16.gmra.mrb[0].mxu0 %v246
    %v332 = vpop.f32.mrb[0].mxu0
    %v333 = vadd.f32 %v162, %v332
    %v334 = vpop.f32.mrb[0].mxu0
    %v335 = vpop.f32.mrb[0].mxu0
    %v336 = vadd.f32 %v167, %v335
    %v337 = vpop.f32.mrb[0].mxu0
    %338 = vmatprep.mubr.bf16.mxu0 0
    %339 = vmatmul.mubr.bf16.gmra.mrb[0].mxu0 %v249
    %v340 = vpop.f32.mrb[0].mxu0
    %v341 = vadd.f32 %v172, %v340
    %v342 = vpop.f32.mrb[0].mxu0
    %v343 = vpop.f32.mrb[0].mxu0
    %v344 = vadd.f32 %v177, %v343
    %v345 = vpop.f32.mrb[0].mxu0
    %346 = vmatprep.mubr.bf16.mxu0 0
    %347 = vmatmul.mubr.bf16.gmra.mrb[0].mxu0 %v252
    %v348 = vpop.f32.mrb[0].mxu0
    %v349 = vadd.f32 %v182, %v348
    %v350 = vpop.f32.mrb[0].mxu0
    %v351 = vpop.f32.mrb[0].mxu0
    %v352 = vadd.f32 %v187, %v351
    %v353 = vpop.f32.mrb[0].mxu0
    %354 = vdwg.mxu0
    %v355 = vmax.f32 %v293, 0.0
    %v356 = vmax.f32 %v296, 0.0
    %v357 = vmax.f32 %v301, 0.0
    %v358 = vmax.f32 %v304, 0.0
    %v359 = vmax.f32 %v309, 0.0
    %v360 = vmax.f32 %v312, 0.0
    %v361 = vmax.f32 %v317, 0.0
    %v362 = vmax.f32 %v320, 0.0
    %v363 = vmax.f32 %v325, 0.0
    %v364 = vmax.f32 %v328, 0.0
    %v365 = vmax.f32 %v333, 0.0
    %v366 = vmax.f32 %v336, 0.0
    %v367 = vmax.f32 %v341, 0.0
    %v368 = vmax.f32 %v344, 0.0
    %v369 = vmax.f32 %v349, 0.0
    %v370 = vmax.f32 %v352, 0.0
    %v371 = vld [vmem:[%s3] sm:$0xf]
    %v372 = vld [vmem:[%s3 + $0x4] sm:$0xf]
    %v373 = vld [vmem:[%s3 + $0x8] sm:$0xf]
    %v374 = vld [vmem:[%s3 + $0xc] sm:$0xf]
    %v375 = vld [vmem:[%s3 + $0x10] sm:$0xf]
    %v376 = vld [vmem:[%s3 + $0x14] sm:$0xf]
    %v377 = vld [vmem:[%s3 + $0x18] sm:$0xf]
    %v378 = vld [vmem:[%s3 + $0x1c] sm:$0xf]
    %v379 = vld [vmem:[%s3 + $0x20] sm:$0xf]
    %v380 = vld [vmem:[%s3 + $0x24] sm:$0xf]
    %v381 = vld [vmem:[%s3 + $0x28] sm:$0xf]
    %v382 = vld [vmem:[%s3 + $0x2c] sm:$0xf]
    %v383 = vld [vmem:[%s3 + $0x30] sm:$0xf]
    %v384 = vld [vmem:[%s3 + $0x34] sm:$0xf]
    %v385 = vld [vmem:[%s3 + $0x38] sm:$0xf]
    %v386 = vld [vmem:[%s3 + $0x3c] sm:$0xf]
    %v387 = vpack.c.bf16 %v356, %v355
    %v388 = vpack.c.bf16 %v358, %v357
    %v389 = vpack.c.bf16 %v360, %v359
    %v390 = vpack.c.bf16 %v362, %v361
    %v391 = vpack.c.bf16 %v364, %v363
    %v392 = vpack.c.bf16 %v366, %v365
    %v393 = vpack.c.bf16 %v368, %v367
    %v394 = vpack.c.bf16 %v370, %v369
    %v395 = vld [vmem:[%s4] sm:$0xff]
    %v396 = vld [vmem:[%s4 + $0x8] sm:$0xff]
    %v397 = vld [vmem:[%s4 + $0x10] sm:$0xff]
    %v398 = vld [vmem:[%s4 + $0x18] sm:$0xff]
    %v399 = vld [vmem:[%s4 + $0x20] sm:$0xff]
    %v400 = vld [vmem:[%s4 + $0x28] sm:$0xff]
    %v401 = vld [vmem:[%s4 + $0x30] sm:$0xff]
    %v402 = vld [vmem:[%s4 + $0x38] sm:$0xff]
    %v403 = vld [vmem:[%s4 + $0x40] sm:$0xff]
    %v404 = vld [vmem:[%s4 + $0x48] sm:$0xff]
    %v405 = vld [vmem:[%s4 + $0x50] sm:$0xff]
    %v406 = vld [vmem:[%s4 + $0x58] sm:$0xff]
    %v407 = vld [vmem:[%s4 + $0x60] sm:$0xff]
    %v408 = vld [vmem:[%s4 + $0x68] sm:$0xff]
    %v409 = vld [vmem:[%s4 + $0x70] sm:$0xff]
    %v410 = vld [vmem:[%s4 + $0x78] sm:$0xff]
    %412 = vset.pattern.permute.xlu0 0
    %413 = vperm.xlu0 %412, %v395
    %v414 = vpop.permute.xlu0 %413
    %417 = vset.pattern.permute.xlu0 0
    %418 = vperm.xlu0 %417, %v396
    %v419 = vpop.permute.xlu0 %418
    %422 = vset.pattern.permute.xlu0 0
    %423 = vperm.xlu0 %422, %v397
    %v424 = vpop.permute.xlu0 %423
    %427 = vset.pattern.permute.xlu0 0
    %428 = vperm.xlu0 %427, %v398
    %v429 = vpop.permute.xlu0 %428
    %432 = vset.pattern.permute.xlu0 0
    %433 = vperm.xlu0 %432, %v399
    %v434 = vpop.permute.xlu0 %433
    %437 = vset.pattern.permute.xlu0 0
    %438 = vperm.xlu0 %437, %v400
    %v439 = vpop.permute.xlu0 %438
    %442 = vset.pattern.permute.xlu0 0
    %443 = vperm.xlu0 %442, %v401
    %v444 = vpop.permute.xlu0 %443
    %447 = vset.pattern.permute.xlu0 0
    %448 = vperm.xlu0 %447, %v402
    %v449 = vpop.permute.xlu0 %448
    %452 = vset.pattern.permute.xlu0 0
    %453 = vperm.xlu0 %452, %v403
    %v454 = vpop.permute.xlu0 %453
    %457 = vset.pattern.permute.xlu0 0
    %458 = vperm.xlu0 %457, %v404
    %v459 = vpop.permute.xlu0 %458
    %462 = vset.pattern.permute.xlu0 0
    %463 = vperm.xlu0 %462, %v405
    %v464 = vpop.permute.xlu0 %463
    %467 = vset.pattern.permute.xlu0 0
    %468 = vperm.xlu0 %467, %v406
    %v469 = vpop.permute.xlu0 %468
    %472 = vset.pattern.permute.xlu0 0
    %473 = vperm.xlu0 %472, %v407
    %v474 = vpop.permute.xlu0 %473
    %477 = vset.pattern.permute.xlu0 0
    %478 = vperm.xlu0 %477, %v408
    %v479 = vpop.permute.xlu0 %478
    %482 = vset.pattern.permute.xlu0 0
    %483 = vperm.xlu0 %482, %v409
    %v484 = vpop.permute.xlu0 %483
    %487 = vset.pattern.permute.xlu0 0
    %488 = vperm.xlu0 %487, %v410
    %v489 = vpop.permute.xlu0 %488
    %v507 = vunpack.c.l.b16 %v371
    %v508 = vunpack.c.l.b16 %v372
    %v509 = vunpack.c.l.b16 %v373
    %v510 = vunpack.c.l.b16 %v374
    %v511 = vunpack.c.l.b16 %v375
    %v512 = vunpack.c.l.b16 %v376
    %v513 = vunpack.c.l.b16 %v377
    %v514 = vunpack.c.l.b16 %v378
    %v515 = vunpack.c.l.b16 %v379
    %v516 = vunpack.c.l.b16 %v380
    %v517 = vunpack.c.l.b16 %v381
    %v518 = vunpack.c.l.b16 %v382
    %v519 = vunpack.c.l.b16 %v383
    %v520 = vunpack.c.l.b16 %v384
    %v521 = vunpack.c.l.b16 %v385
    %v522 = vunpack.c.l.b16 %v386
    %v523 = vpack.c.b16 %v508, %v507
    %v524 = vpack.c.b16 %v510, %v509
    %v525 = vpack.c.b16 %v512, %v511
    %v526 = vpack.c.b16 %v514, %v513
    %v527 = vpack.c.b16 %v516, %v515
    %v528 = vpack.c.b16 %v518, %v517
    %v529 = vpack.c.b16 %v520, %v519
    %v530 = vpack.c.b16 %v522, %v521
    %539 = vmatprep.subr.bf16.mxu0 0
    %540 = vmatpush1.bf16.msra.mxu0 %v387
    %541 = vmatprep.subr.bf16.mxu0 0
    %542 = vmatpush1.bf16.msra.mxu0 %v388
    %543 = vmatprep.subr.bf16.mxu0 0
    %544 = vmatpush1.bf16.msra.mxu0 %v389
    %545 = vmatprep.subr.bf16.mxu0 0
    %546 = vmatpush1.bf16.msra.mxu0 %v390
    %547 = vmatprep.subr.bf16.mxu0 0
    %548 = vmatpush1.bf16.msra.mxu0 %v391
    %549 = vmatprep.subr.bf16.mxu0 0
    %550 = vmatpush1.bf16.msra.mxu0 %v392
    %551 = vmatprep.subr.bf16.mxu0 0
    %552 = vmatpush1.bf16.msra.mxu0 %v393
    %553 = vmatprep.subr.bf16.mxu0 0
    %554 = vmatpush1.bf16.msra.mxu0 %v394
    %555 = vmatprep.subr.bf16.mxu0 0
    %556 = vmatpush1.bf16.msra.mxu0 0
    %557 = vmatprep.subr.bf16.mxu0 0
    %558 = vmatpush1.bf16.msra.mxu0 0
    %559 = vmatprep.subr.bf16.mxu0 0
    %560 = vmatpush1.bf16.msra.mxu0 0
    %561 = vmatprep.subr.bf16.mxu0 0
    %562 = vmatpush1.bf16.msra.mxu0 0
    %563 = vmatprep.subr.bf16.mxu0 0
    %564 = vmatpush1.bf16.msra.mxu0 0
    %565 = vmatprep.subr.bf16.mxu0 0
    %566 = vmatpush1.bf16.msra.mxu0 0
    %567 = vmatprep.subr.bf16.mxu0 0
    %568 = vmatpush1.bf16.msra.mxu0 0
    %569 = vmatprep.subr.bf16.mxu0 0
    %570 = vmatpush1.bf16.msra.mxu0 0
    %571 = vmatprep.mubr.bf16.mxu0 0
    %572 = vmatmul.mubr.bf16.gmra.mrb[0].mxu0 %v523
    %v573 = vpop.f32.mrb[0].mxu0
    %v574 = vadd.f32 %v414, %v573
    %v575 = vpop.f32.mrb[0].mxu0
    %v576 = vpop.f32.mrb[0].mxu0
    %v577 = vadd.f32 %v419, %v576
    %v578 = vpop.f32.mrb[0].mxu0
    %579 = vmatprep.mubr.bf16.mxu0 0
    %580 = vmatmul.mubr.bf16.gmra.mrb[0].mxu0 %v524
    %v581 = vpop.f32.mrb[0].mxu0
    %v582 = vadd.f32 %v424, %v581
    %v583 = vpop.f32.mrb[0].mxu0
    %v584 = vpop.f32.mrb[0].mxu0
    %v585 = vadd.f32 %v429, %v584
    %v586 = vpop.f32.mrb[0].mxu0
    %587 = vmatprep.mubr.bf16.mxu0 0
    %588 = vmatmul.mubr.bf16.gmra.mrb[0].mxu0 %v525
    %v589 = vpop.f32.mrb[0].mxu0
    %v590 = vadd.f32 %v434, %v589
    %v591 = vpop.f32.mrb[0].mxu0
    %v592 = vpop.f32.mrb[0].mxu0
    %v593 = vadd.f32 %v439, %v592
    %v594 = vpop.f32.mrb[0].mxu0
    %595 = vmatprep.mubr.bf16.mxu0 0
    %596 = vmatmul.mubr.bf16.gmra.mrb[0].mxu0 %v526
    %v597 = vpop.f32.mrb[0].mxu0
    %v598 = vadd.f32 %v444, %v597
    %v599 = vpop.f32.mrb[0].mxu0
    %v600 = vpop.f32.mrb[0].mxu0
    %v601 = vadd.f32 %v449, %v600
    %v602 = vpop.f32.mrb[0].mxu0
    %603 = vmatprep.mubr.bf16.mxu0 0
    %604 = vmatmul.mubr.bf16.gmra.mrb[0].mxu0 %v527
    %v605 = vpop.f32.mrb[0].mxu0
    %v606 = vadd.f32 %v454, %v605
    %v607 = vpop.f32.mrb[0].mxu0
    %v608 = vpop.f32.mrb[0].mxu0
    %v609 = vadd.f32 %v459, %v608
    %v610 = vpop.f32.mrb[0].mxu0
    %611 = vmatprep.mubr.bf16.mxu0 0
    %612 = vmatmul.mubr.bf16.gmra.mrb[0].mxu0 %v528
    %v613 = vpop.f32.mrb[0].mxu0
    %v614 = vadd.f32 %v464, %v613
    %v615 = vpop.f32.mrb[0].mxu0
    %v616 = vpop.f32.mrb[0].mxu0
    %v617 = vadd.f32 %v469, %v616
    %v618 = vpop.f32.mrb[0].mxu0
    %619 = vmatprep.mubr.bf16.mxu0 0
    %620 = vmatmul.mubr.bf16.gmra.mrb[0].mxu0 %v529
    %v621 = vpop.f32.mrb[0].mxu0
    %v622 = vadd.f32 %v474, %v621
    %v623 = vpop.f32.mrb[0].mxu0
    %v624 = vpop.f32.mrb[0].mxu0
    %v625 = vadd.f32 %v479, %v624
    %v626 = vpop.f32.mrb[0].mxu0
    %627 = vmatprep.mubr.bf16.mxu0 0
    %628 = vmatmul.mubr.bf16.gmra.mrb[0].mxu0 %v530
    %v629 = vpop.f32.mrb[0].mxu0
    %v630 = vadd.f32 %v484, %v629
    %v631 = vpop.f32.mrb[0].mxu0
    %v632 = vpop.f32.mrb[0].mxu0
    %v633 = vadd.f32 %v489, %v632
    %v634 = vpop.f32.mrb[0].mxu0
    %635 = vdwg.mxu0
    %v636 = vmax.f32 %v574, 0.0
    %v637 = vmax.f32 %v577, 0.0
    %v638 = vmax.f32 %v582, 0.0
    %v639 = vmax.f32 %v585, 0.0
    %v640 = vmax.f32 %v590, 0.0
    %v641 = vmax.f32 %v593, 0.0
    %v642 = vmax.f32 %v598, 0.0
    %v643 = vmax.f32 %v601, 0.0
    %v644 = vmax.f32 %v606, 0.0
    %v645 = vmax.f32 %v609, 0.0
    %v646 = vmax.f32 %v614, 0.0
    %v647 = vmax.f32 %v617, 0.0
    %v648 = vmax.f32 %v622, 0.0
    %v649 = vmax.f32 %v625, 0.0
    %v650 = vmax.f32 %v630, 0.0
    %v651 = vmax.f32 %v633, 0.0
    %v652 = vld [vmem:[%s5] sm:$0xf]
    %v653 = vpack.c.bf16 %v637, %v636
    %v654 = vpack.c.bf16 %v639, %v638
    %v655 = vpack.c.bf16 %v641, %v640
    %v656 = vpack.c.bf16 %v643, %v642
    %v657 = vpack.c.bf16 %v645, %v644
    %v658 = vpack.c.bf16 %v647, %v646
    %v659 = vpack.c.bf16 %v649, %v648
    %v660 = vpack.c.bf16 %v651, %v650
    %v661 = vld [vmem:[%s6] sm:$0xff]
    %663 = vset.pattern.permute.xlu0 0
    %664 = vperm.xlu0 %663, %v661
    %v665 = vpop.permute.xlu0 %664
    %667 = vmatprep.subr.bf16.mxu0 0
    %668 = vmatpush1.bf16.msra.mxu0 %v653
    %669 = vmatprep.subr.bf16.mxu0 0
    %670 = vmatpush1.bf16.msra.mxu0 %v654
    %671 = vmatprep.subr.bf16.mxu0 0
    %672 = vmatpush1.bf16.msra.mxu0 %v655
    %673 = vmatprep.subr.bf16.mxu0 0
    %674 = vmatpush1.bf16.msra.mxu0 %v656
    %675 = vmatprep.subr.bf16.mxu0 0
    %676 = vmatpush1.bf16.msra.mxu0 %v657
    %677 = vmatprep.subr.bf16.mxu0 0
    %678 = vmatpush1.bf16.msra.mxu0 %v658
    %679 = vmatprep.subr.bf16.mxu0 0
    %680 = vmatpush1.bf16.msra.mxu0 %v659
    %681 = vmatprep.subr.bf16.mxu0 0
    %682 = vmatpush1.bf16.msra.mxu0 %v660
    %683 = vmatprep.subr.bf16.mxu0 0
    %684 = vmatpush1.bf16.msra.mxu0 0
    %685 = vmatprep.subr.bf16.mxu0 0
    %686 = vmatpush1.bf16.msra.mxu0 0
    %687 = vmatprep.subr.bf16.mxu0 0
    %688 = vmatpush1.bf16.msra.mxu0 0
    %689 = vmatprep.subr.bf16.mxu0 0
    %690 = vmatpush1.bf16.msra.mxu0 0
    %691 = vmatprep.subr.bf16.mxu0 0
    %692 = vmatpush1.bf16.msra.mxu0 0
    %693 = vmatprep.subr.bf16.mxu0 0
    %694 = vmatpush1.bf16.msra.mxu0 0
    %695 = vmatprep.subr.bf16.mxu0 0
    %696 = vmatpush1.bf16.msra.mxu0 0
    %697 = vmatprep.subr.bf16.mxu0 0
    %698 = vmatpush1.bf16.msra.mxu0 0
    %699 = vmatprep.mubr.bf16.mxu0 0
    %700 = vmatmul.mubr.bf16.gmra.mrb[0].mxu0 %v652
    %v701 = vpop.f32.mrb[0].mxu0
    %v702 = vadd.f32 %v665, %v701
    %v703 = vpop.f32.mrb[0].mxu0
    %v704 = vpop.f32.mrb[0].mxu0
    %v705 = vpop.f32.mrb[0].mxu0
    %706 = vdwg.mxu0
    %707 = vst [vmem:[#allocation2] sm:$0xff] %v702
    // Predicated region
    $region30: #{tpu_custom_call.1} parent=1 // pred_check
      _
    $region31: #{tpu_custom_call.1} parent=1 // pred_check_branch
      %709 = sbr.rel (0) target = $region33
    $region32: #{tpu_custom_call.1} parent=1 // pred_region
      %s711 = ssub.s32 128, 128
      %712 = vsyncadd [#allocation3], %s711
      %s714 = sshll.u32 [#allocation2], 4
      %s715 = int_to_ptr.vmem [resolvable:$true] %s714
      %717 = dma.vmem_to_hbm [thread:$0]  %s715, 128, %s7, [#allocation3]
    $region33: #{tpu_custom_call.1} parent=1 // pred_fallthru
      _
    // Predicated region
    $region34: #{tpu_custom_call.1} parent=1 // pred_check
      _
    $region35: #{tpu_custom_call.1} parent=1 // pred_check_branch
      %719 = sbr.rel (0) target = $region37
    $region36: #{tpu_custom_call.1} parent=1 // pred_region
      %720 = dma.done [#allocation3], 128
    $region37: #{tpu_custom_call.1} parent=1 // pred_fallthru
      _
    %721 = vsyncpa [#allocation3], 1

</llo_original>
